<compile_context>
chip_gen: v5e
topology: v5e:2x2
jax: 0.10.0
libtpu: 0.0.40
codegen_flags: <defaults>
</compile_context>

<pallas_src>
import functools

import jax
import jax.numpy as jnp
from jax.experimental import pallas as pl
from jax.experimental.pallas import tpu as pltpu


def _round_up(x, m):
    return (x + m - 1) // m * m


_TM = 512  # row tile for the 1x1-conv matmuls (multiple of 8, good MXU/DMA size)


# ----------------------------- Pallas kernels -----------------------------

def _mm_bias_kernel(x_ref, w_ref, b_ref, o_ref, *, relu):
    # (tm, K) @ (K, Cout): bf16 inputs, f32 accumulation on the MXU.
    acc = jnp.dot(x_ref[...], w_ref[...], preferred_element_type=jnp.float32)
    acc = acc + b_ref[...]
    if relu:
        acc = jnp.maximum(acc, 0.0)
    o_ref[...] = acc.astype(o_ref.dtype)


def _mm_bias_res_relu_kernel(x_ref, w_ref, b_ref, r_ref, o_ref):
    # conv3 of non-final blocks: matmul + bias + residual + ReLU fused.
    acc = jnp.dot(x_ref[...], w_ref[...], preferred_element_type=jnp.float32)
    acc = acc + b_ref[...] + r_ref[...].astype(jnp.float32)
    o_ref[...] = jnp.maximum(acc, 0.0).astype(o_ref.dtype)


def _mm_bias_res_relu_gap_kernel(x_ref, w_ref, b_ref, r_ref, o_ref, *, inv_hw):
    # Final block conv3 fused with residual, ReLU and global average pool:
    # emits only (1, Cout) per ROI -> the big (N,H,W,Cout) map never hits HBM.
    acc = jnp.dot(x_ref[0], w_ref[...], preferred_element_type=jnp.float32)
    acc = acc + b_ref[...] + r_ref[0].astype(jnp.float32)
    acc = jnp.maximum(acc, 0.0)
    o_ref[0, :, :] = (jnp.sum(acc, axis=0, keepdims=True) * inv_hw).astype(o_ref.dtype)


def _conv3x3_kernel(x_ref, w_ref, b_ref, o_ref, *, offsets, phases, l_out):
    # 9-tap accumulation (replaces im2col): every tap is a contiguous
    # (l_out, Cin) slice of the flattened / phase-decomposed padded activation.
    acc = None
    for t in range(9):
        xs = x_ref[0, phases[t], pl.ds(offsets[t], l_out), :]
        part = jnp.dot(xs, w_ref[t], preferred_element_type=jnp.float32)
        acc = part if acc is None else acc + part
    acc = jnp.maximum(acc + b_ref[...], 0.0)
    o_ref[0, :, :] = acc.astype(o_ref.dtype)


# --------------------------- pallas_call wrappers ---------------------------

def _pallas_matmul_bias(x2d, w, b, *, relu, residual=None):
    """Row-tiled (M, K) @ (K, Cout) with fused bias (+residual) (+ReLU)."""
    M, K = x2d.shape
    Cout = w.shape[1]
    tm = min(_TM, _round_up(M, 8))
    Mp = _round_up(M, tm)
    if Mp != M:                               # zero-pad rows; padded rows discarded
        x2d = jnp.pad(x2d, ((0, Mp - M), (0, 0)))
        if residual is not None:
            residual = jnp.pad(residual, ((0, Mp - M), (0, 0)))
    b2 = b.reshape(1, Cout).astype(jnp.float32)

    x_spec = pl.BlockSpec((tm, K), lambda i: (i, 0))
    w_spec = pl.BlockSpec((K, Cout), lambda i: (0, 0))
    b_spec = pl.BlockSpec((1, Cout), lambda i: (0, 0))
    o_spec = pl.BlockSpec((tm, Cout), lambda i: (i, 0))
    params = pltpu.CompilerParams(dimension_semantics=("parallel",))

    if residual is None:
        out = pl.pallas_call(
            functools.partial(_mm_bias_kernel, relu=relu),
            out_shape=jax.ShapeDtypeStruct((Mp, Cout), jnp.bfloat16),
            grid=(Mp // tm,),
            in_specs=[x_spec, w_spec, b_spec],
            out_specs=o_spec,
            compiler_params=params,
        )(x2d, w, b2)
    else:
        r_spec = pl.BlockSpec((tm, Cout), lambda i: (i, 0))
        out = pl.pallas_call(
            _mm_bias_res_relu_kernel,
            out_shape=jax.ShapeDtypeStruct((Mp, Cout), jnp.bfloat16),
            grid=(Mp // tm,),
            in_specs=[x_spec, w_spec, b_spec, r_spec],
            out_specs=o_spec,
            compiler_params=params,
        )(x2d, w, b2, residual)
    return out[:M] if Mp != M else out


def _conv1x1(x, w, b, *, relu, residual=None):
    N, H, W, Cin = x.shape
    Cout = w.shape[1]
    xm = x.reshape(N * H * W, Cin)
    rm = residual.reshape(N * H * W, Cout) if residual is not None else None
    y = _pallas_matmul_bias(xm, w, b, relu=relu, residual=rm)
    return y.reshape(N, H, W, Cout)


def _conv3x3(x, w_taps, b, *, stride):
    """3x3 conv, padding=1, fused bias+ReLU.  x: (N, H, W, Cin) bf16."""
    N, H, W, Cin = x.shape
    Cout = w_taps.shape[-1]
    Ho = (H - 1) // stride + 1
    Wo = (W - 1) // stride + 1
    b2 = b.reshape(1, Cout).astype(jnp.float32)

    if stride == 1:
        Wrow = W + 2                        # padded row width
        # pad 1 top/left/right, 2 bottom (conv pad + flat-slice margin)
        xp = jnp.pad(x, ((0, 0), (1, 2), (1, 1), (0, 0)))
        lin = (H + 3) * Wrow
        xin = xp.reshape(N, 1, lin, Cin)
        nphase = 1
        offsets = tuple(dy * Wrow + dx for dy in range(3) for dx in range(3))
        phases = (0,) * 9
    else:  # stride == 2: polyphase split so every tap is a stride-1 flat slice
        Hpad = _round_up(H + 2, 2)
        Wpad = _round_up(W + 2, 2)
        Hext = Hpad + 2                     # +2 rows -> one extra phase row (margin)
        xp = jnp.pad(x, ((0, 0), (1, Hext - H - 1), (1, Wpad - W - 1), (0, 0)))
        Wrow = Wpad // 2
        lin = (Hext // 2) * Wrow
        ph = xp.reshape(N, Hext // 2, 2, Wrow, 2, Cin)
        ph = jnp.transpose(ph, (0, 2, 4, 1, 3, 5))     # (N, ry, rx, h, w, C)
        xin = ph.reshape(N, 4, lin, Cin)
        nphase = 4
        offsets, phases = [], []
        for dy in range(3):
            for dx in range(3):
                phases.append(2 * (dy % 2) + (dx % 2))
                offsets.append((dy // 2) * Wrow + (dx // 2))
        offsets, phases = tuple(offsets), tuple(phases)

    l_out = Ho * Wrow
    kern = functools.partial(_conv3x3_kernel, offsets=offsets, phases=phases,
                             l_out=l_out)
    out_flat = pl.pallas_call(
        kern,
        out_shape=jax.ShapeDtypeStruct((N, l_out, Cout), jnp.bfloat16),
        grid=(N,),
        in_specs=[pl.BlockSpec((1, nphase, lin, Cin), lambda n: (n, 0, 0, 0)),
                  pl.BlockSpec((9, Cin, Cout), lambda n: (0, 0, 0)),
                  pl.BlockSpec((1, Cout), lambda n: (0, 0))],
        out_specs=pl.BlockSpec((1, l_out, Cout), lambda n: (n, 0, 0)),
        compiler_params=pltpu.CompilerParams(dimension_semantics=("parallel",)),
    )(xin, w_taps, b2)
    # Output rows are Wrow wide; only the first Wo columns are valid conv outputs.
    return out_flat.reshape(N, Ho, Wrow, Cout)[:, :, :Wo, :]


def _conv1x1_res_relu_gap(y, w, b, identity):
    """Final block conv3 + residual + ReLU + global average pool, per ROI."""
    N, Ho, Wo, Cin = y.shape
    Cout = w.shape[1]
    hw = Ho * Wo
    y2 = y.reshape(N, hw, Cin)
    r2 = identity.reshape(N, hw, Cout)
    b2 = b.reshape(1, Cout).astype(jnp.float32)
    kern = functools.partial(_mm_bias_res_relu_gap_kernel, inv_hw=1.0 / float(hw))
    out = pl.pallas_call(
        kern,
        out_shape=jax.ShapeDtypeStruct((N, 1, Cout), jnp.float32),
        grid=(N,),
        in_specs=[pl.BlockSpec((1, hw, Cin), lambda n: (n, 0, 0)),
                  pl.BlockSpec((Cin, Cout), lambda n: (0, 0)),
                  pl.BlockSpec((1, Cout), lambda n: (0, 0)),
                  pl.BlockSpec((1, hw, Cout), lambda n: (n, 0, 0))],
        out_specs=pl.BlockSpec((1, 1, Cout), lambda n: (n, 0, 0)),
        compiler_params=pltpu.CompilerParams(dimension_semantics=("parallel",)),
    )(y2, w, b2, r2)
    return out[:, 0, :]


# ------------------ parameters (frozen BN folded into convs) ------------------

def _init_conv(key, c_out, c_in, k):
    fan_in = c_in * k * k
    return jax.random.normal(key, (c_out, c_in, k, k), jnp.float32) / jnp.sqrt(fan_in)


def _init_bn(key, c):
    k1, k2, k3, k4 = jax.random.split(key, 4)
    gamma = jax.random.uniform(k1, (c,), minval=0.5, maxval=1.5, dtype=jnp.float32)
    beta = 0.1 * jax.random.normal(k2, (c,), jnp.float32)
    mean = 0.1 * jax.random.normal(k3, (c,), jnp.float32)
    var = jax.random.uniform(k4, (c,), minval=0.5, maxval=1.5, dtype=jnp.float32)
    return gamma, beta, mean, var


def _fold_bn(w_oihw, bn, eps=1e-5):
    gamma, beta, mean, var = bn
    scale = gamma / jnp.sqrt(var + eps)
    return w_oihw * scale[:, None, None, None], beta - mean * scale


def _to_1x1_weight(w_oihw):
    # (Cout, Cin, 1, 1) -> (Cin, Cout)
    return jnp.transpose(w_oihw[:, :, 0, 0], (1, 0))


def _to_tap_weight(w_oihw):
    # (Cout, Cin, 3, 3) -> (9, Cin, Cout), tap order t = dy*3 + dx
    c_out, c_in = w_oihw.shape[0], w_oihw.shape[1]
    return jnp.transpose(w_oihw, (2, 3, 1, 0)).reshape(9, c_in, c_out)


def make_layer4_params(key, c_in, c_mid, c_out, num_blocks=3):
    blocks = []
    for bidx in range(num_blocks):
        stride = 2 if bidx == 0 else 1
        cin = c_in if bidx == 0 else c_out
        keys = jax.random.split(jax.random.fold_in(key, bidx), 8)
        blk = {"stride": stride}

        w1, bn1 = _init_conv(keys[0], c_mid, cin, 1), _init_bn(keys[1], c_mid)
        wf, bf = _fold_bn(w1, bn1)
        blk["w1_oihw"], blk["b1"] = wf, bf
        blk["w1"] = _to_1x1_weight(wf).astype(jnp.bfloat16)

        w2, bn2 = _init_conv(keys[2], c_mid, c_mid, 3), _init_bn(keys[3], c_mid)
        wf, bf = _fold_bn(w2, bn2)
        blk["w2_oihw"], blk["b2"] = wf, bf
        blk["w2_taps"] = _to_tap_weight(wf).astype(jnp.bfloat16)

        w3, bn3 = _init_conv(keys[4], c_out, c_mid, 1), _init_bn(keys[5], c_out)
        wf, bf = _fold_bn(w3, bn3)
        blk["w3_oihw"], blk["b3"] = wf, bf
        blk["w3"] = _to_1x1_weight(wf).astype(jnp.bfloat16)

        if bidx == 0:  # downsample branch
            wd, bnd = _init_conv(keys[6], c_out, cin, 1), _init_bn(keys[7], c_out)
            wf, bf = _fold_bn(wd, bnd)
            blk["wd_oihw"], blk["bd"] = wf, bf
            blk["wd"] = _to_1x1_weight(wf).astype(jnp.bfloat16)
        blocks.append(blk)
    return blocks


# ------------------------------ forward pass ------------------------------

def pool_to_feature_vector(rois_nchw, blocks):
    x = jnp.transpose(rois_nchw, (0, 2, 3, 1)).astype(jnp.bfloat16)  # NCHW -> NHWC bf16
    nb = len(blocks)
    out = None
    for bi, blk in enumerate(blocks):
        s = blk["stride"]
        y = _conv1x1(x, blk["w1"], blk["b1"], relu=True)
        y = _conv3x3(y, blk["w2_taps"], blk["b2"], stride=s)
        if "wd" in blk:
            # stride-2 subsample of the identity path (cheap XLA slice, bf16)
            xs = x[:, ::s, ::s, :] if s > 1 else x
            identity = _conv1x1(xs, blk["wd"], blk["bd"], relu=False)
        else:
            identity = x
        if bi == nb - 1:
            out = _conv1x1_res_relu_gap(y, blk["w3"], blk["b3"], identity)
        else:
            x = _conv1x1(y, blk["w3"], blk["b3"], relu=True, residual=identity)
    return out


# ---------------------------- pure-JAX reference ----------------------------

def _ref_conv(x, w_oihw, b, stride, pad):
    y = jax.lax.conv_general_dilated(
        x, jnp.transpose(w_oihw, (2, 3, 1, 0)),
        window_strides=(stride, stride),
        padding=((pad, pad), (pad, pad)),
        dimension_numbers=("NHWC", "HWIO", "NHWC"),
        precision=jax.lax.Precision.HIGHEST)
    return y + b


def ref_forward(rois_nchw, blocks):
    x = jnp.transpose(rois_nchw, (0, 2, 3, 1))
    for blk in blocks:
        s = blk["stride"]
        y = jax.nn.relu(_ref_conv(x, blk["w1_oihw"], blk["b1"], 1, 0))
        y = jax.nn.relu(_ref_conv(y, blk["w2_oihw"], blk["b2"], s, 1))
        if "wd_oihw" in blk:
            identity = _ref_conv(x, blk["wd_oihw"], blk["bd"], s, 0)
        else:
            identity = x
        x = jax.nn.relu(_ref_conv(y, blk["w3_oihw"], blk["b3"], 1, 0) + identity)
    return x.mean(axis=(1, 2))


# ----------------------------------- main -----------------------------------

if __name__ == "__main__":
    key = jax.random.PRNGKey(0)
    k_par, k_x = jax.random.split(key)

    # Small stand-ins for ResNet layer4 (real: 1024 -> [512] -> 2048, 3 blocks).
    C_IN, C_MID, C_OUT = 16, 8, 32
    N, H, W = 2, 8, 8

    blocks = make_layer4_params(k_par, C_IN, C_MID, C_OUT, num_blocks=3)
    rois = jax.random.normal(k_x, (N, C_IN, H, W), jnp.float32)   # NCHW, like PyTorch

    out = jax.block_until_ready(pool_to_feature_vector(rois, blocks))

    ref = ref_forward(rois, blocks)
    if out.shape != (N, C_OUT):
        raise RuntimeError(f"bad output shape {out.shape}, expected {(N, C_OUT)}")
    # bf16 activations/weights with f32 accumulation -> looser tolerance vs f32 ref.
    if not jnp.allclose(out, ref, rtol=3e-2, atol=3e-2):
        raise RuntimeError("mismatch vs reference, max abs diff = "
                           f"{float(jnp.max(jnp.abs(out - ref)))}")
    print("KERNEL_OK")
</pallas_src>

<mosaic_0001>
module attributes {stable_mosaic.version = 11 : i64} {
  func.func @_mm_bias_kernel(%arg0: i32, %arg1: memref<128x16xbf16, #tpu.memory_space<vmem>>, %arg2: memref<16x8xbf16, #tpu.memory_space<vmem>>, %arg3: memref<1x8xf32, #tpu.memory_space<vmem>>, %arg4: memref<128x8xbf16, #tpu.memory_space<vmem>>) attributes {dimension_semantics = [#tpu.dimension_semantics<parallel>], iteration_bounds = array<i64: 1>, scalar_prefetch = 0 : i64, scratch_operands = 0 : i64, tpu.core_type = #tpu.core_type<tc>, window_params = [{transform_indices = @transform_0, window_bounds = array<i64: 128, 16>}, {pipeline_mode = #tpu.pipeline_mode<synchronous>, transform_indices = @transform_1, window_bounds = array<i64: 16, 8>}, {pipeline_mode = #tpu.pipeline_mode<synchronous>, transform_indices = @transform_2, window_bounds = array<i64: 1, 8>}, {transform_indices = @transform_3, window_bounds = array<i64: 128, 8>}]} {
    %c0 = arith.constant 0 : index
    %c0_0 = arith.constant 0 : index
    %0 = vector.load %arg1[%c0, %c0_0] : memref<128x16xbf16, #tpu.memory_space<vmem>>, vector<128x16xbf16>
    %c0_1 = arith.constant 0 : index
    %c0_2 = arith.constant 0 : index
    %1 = vector.load %arg2[%c0_1, %c0_2] : memref<16x8xbf16, #tpu.memory_space<vmem>>, vector<16x8xbf16>
    %cst = arith.constant dense<0.000000e+00> : vector<128x8xf32>
    %2 = tpu.matmul %0, %1, %cst {dimension_numbers = #tpu.dot_dimension_numbers<[1], [0], [0], [1], [0, 0, 1, 1], [], []>} : vector<128x16xbf16>, vector<16x8xbf16>, vector<128x8xf32> -> vector<128x8xf32>
    %c0_3 = arith.constant 0 : index
    %c0_4 = arith.constant 0 : index
    %3 = vector.load %arg3[%c0_3, %c0_4] : memref<1x8xf32, #tpu.memory_space<vmem>>, vector<1x8xf32>
    %4 = vector.broadcast %3 : vector<1x8xf32> to vector<128x8xf32>
    %5 = arith.addf %2, %4 : vector<128x8xf32>
    %cst_5 = arith.constant 0.000000e+00 : f32
    %6 = vector.broadcast %cst_5 : f32 to vector<128x8xf32>
    %7 = arith.maximumf %5, %6 : vector<128x8xf32>
    %8 = arith.truncf %7 : vector<128x8xf32> to vector<128x8xbf16>
    %c0_6 = arith.constant 0 : index
    %c0_7 = arith.constant 0 : index
    %9 = vector.load %arg4[%c0_6, %c0_7] : memref<128x8xbf16, #tpu.memory_space<vmem>>, vector<128x8xbf16>
    tpu.vector_store %arg4[%c0_6, %c0_7], %8 {strides = array<i32>} : memref<128x8xbf16, #tpu.memory_space<vmem>>, vector<128x8xbf16>,
    return
  }
  func.func @transform_0(%arg0: i32) -> (i32, i32) {
    %c0_i32 = arith.constant 0 : i32
    %c0_i32_0 = arith.constant 0 : i32
    return %arg0, %c0_i32 : i32, i32
  }
  func.func @transform_1(%arg0: i32) -> (i32, i32) {
    %c0_i32 = arith.constant 0 : i32
    %c0_i32_0 = arith.constant 0 : i32
    %c0_i32_1 = arith.constant 0 : i32
    return %c0_i32, %c0_i32_0 : i32, i32
  }
  func.func @transform_2(%arg0: i32) -> (i32, i32) {
    %c0_i32 = arith.constant 0 : i32
    %c0_i32_0 = arith.constant 0 : i32
    %c0_i32_1 = arith.constant 0 : i32
    return %c0_i32, %c0_i32_0 : i32, i32
  }
  func.func @transform_3(%arg0: i32) -> (i32, i32) {
    %c0_i32 = arith.constant 0 : i32
    %c0_i32_0 = arith.constant 0 : i32
    return %arg0, %c0_i32 : i32, i32
  }
}

</mosaic_0001>

<llo_original>
// kernel: tpu_custom_call.1
$region0: #{tpu_custom_call.1}
  #allocation0 [shape = 'u32[]', space=smem, size = 0x4, offset = 0x4, fixed_abs, tag = 'smem constant byte address 0x4 - core index']
  #allocation1 [shape = 'u32[72,128]{1,0:T(1,128)}', space=vmem, size = 0x9000, scoped, tag = 'internal scratch']
  %s0 = inlined_call_operand.vmem [shape: bf16[128,16], index: 0, kind: input, shape index: {}]
  %s1 = inlined_call_operand.vmem [shape: bf16[16,8], index: 1, kind: input, shape index: {}]
  %s2 = inlined_call_operand.vmem [shape: f32[1,8], index: 2, kind: input, shape index: {}]
  %s3 = inlined_call_operand.vmem [shape: bf16[128,8], index: 3, kind: output, shape index: {}]
  %s4 = sld [smem:[#allocation0]]
  $region22: #{tpu_custom_call.1} parent=0
    _
  %s6 = ssub.s32 1, %s4
  %s7 = scalar_select 0, %s6, %s4
  // Predicated region
  $region2: #{tpu_custom_call.1} parent=0 // pred_check
    _
  $region3: #{tpu_custom_call.1} parent=0 // pred_check_branch
    %9 = sbr.rel (0) target = $region5
  $region4: #{tpu_custom_call.1} parent=0 // pred_region
    _
  $region5: #{tpu_custom_call.1} parent=0 // pred_fallthru
    _
  // Predicated region
  $region6: #{tpu_custom_call.1} parent=0 // pred_check
    _
  $region7: #{tpu_custom_call.1} parent=0 // pred_check_branch
    %11 = sbr.rel (0) target = $region9
  $region8: #{tpu_custom_call.1} parent=0 // pred_region
    _
  $region9: #{tpu_custom_call.1} parent=0 // pred_fallthru
    _
  // Predicated region
  $region10: #{tpu_custom_call.1} parent=0 // pred_check
    _
  $region11: #{tpu_custom_call.1} parent=0 // pred_check_branch
    %13 = sbr.rel (0) target = $region13
  $region12: #{tpu_custom_call.1} parent=0 // pred_region
    _
  $region13: #{tpu_custom_call.1} parent=0 // pred_fallthru
    _
  %v15 = vld [vmem:[%s0] sm:$0xf]
  %v16 = vld [vmem:[%s0 + $0x4] sm:$0xf]
  %v17 = vld [vmem:[%s0 + $0x8] sm:$0xf]
  %v18 = vld [vmem:[%s0 + $0xc] sm:$0xf]
  %v19 = vld [vmem:[%s0 + $0x10] sm:$0xf]
  %v20 = vld [vmem:[%s0 + $0x14] sm:$0xf]
  %v21 = vld [vmem:[%s0 + $0x18] sm:$0xf]
  %v22 = vld [vmem:[%s0 + $0x1c] sm:$0xf]
  %v23 = vld [vmem:[%s0 + $0x20] sm:$0xf]
  %v24 = vld [vmem:[%s0 + $0x24] sm:$0xf]
  %v25 = vld [vmem:[%s0 + $0x28] sm:$0xf]
  %v26 = vld [vmem:[%s0 + $0x2c] sm:$0xf]
  %v27 = vld [vmem:[%s0 + $0x30] sm:$0xf]
  %v28 = vld [vmem:[%s0 + $0x34] sm:$0xf]
  %v29 = vld [vmem:[%s0 + $0x38] sm:$0xf]
  %v30 = vld [vmem:[%s0 + $0x3c] sm:$0xf]
  %v31 = vld [vmem:[%s1] sm:$0xf]
  %v32 = vld [vmem:[%s1 + $0x4] sm:$0xf]
  %v33 = vld [vmem:[%s2] sm:$0x1]
  %v35 = vperm.slane %v33, 0
  %v53 = vunpack.c.l.b16 %v15
  %v54 = vunpack.c.l.b16 %v16
  %v55 = vunpack.c.l.b16 %v17
  %v56 = vunpack.c.l.b16 %v18
  %v57 = vunpack.c.l.b16 %v19
  %v58 = vunpack.c.l.b16 %v20
  %v59 = vunpack.c.l.b16 %v21
  %v60 = vunpack.c.l.b16 %v22
  %v61 = vunpack.c.l.b16 %v23
  %v62 = vunpack.c.l.b16 %v24
  %v63 = vunpack.c.l.b16 %v25
  %v64 = vunpack.c.l.b16 %v26
  %v65 = vunpack.c.l.b16 %v27
  %v66 = vunpack.c.l.b16 %v28
  %v67 = vunpack.c.l.b16 %v29
  %v68 = vunpack.c.l.b16 %v30
  %v69 = vpack.c.b16 %v54, %v53
  %v70 = vpack.c.b16 %v56, %v55
  %v71 = vpack.c.b16 %v58, %v57
  %v72 = vpack.c.b16 %v60, %v59
  %v73 = vpack.c.b16 %v62, %v61
  %v74 = vpack.c.b16 %v64, %v63
  %v75 = vpack.c.b16 %v66, %v65
  %v76 = vpack.c.b16 %v68, %v67
  %v79 = vunpack.c.l.b16 %v31
  %v80 = vunpack.c.l.b16 %v32
  %v81 = vpack.c.b16 %v80, %v79
  %vm83 = vcmask 130048
  %v85 = vsel %vm83, %v69, 0
  %v88 = vsel %vm83, %v70, 0
  %v91 = vsel %vm83, %v71, 0
  %v94 = vsel %vm83, %v72, 0
  %v97 = vsel %vm83, %v73, 0
  %v100 = vsel %vm83, %v74, 0
  %v103 = vsel %vm83, %v75, 0
  %v106 = vsel %vm83, %v76, 0
  %108 = vmatpush.bf16.msra.mxu0 0
  %109 = vmatpush.bf16.msra.mxu0 0
  %110 = vmatpush.bf16.msra.mxu0 0
  %111 = vmatpush.bf16.msra.mxu0 0
  %112 = vmatpush.bf16.msra.mxu0 0
  %113 = vmatpush.bf16.msra.mxu0 0
  %114 = vmatpush.bf16.msra.mxu0 0
  %115 = vmatpush.bf16.msra.mxu0 %v81
  %116 = vmatmul.bf16.gmra.mxu0 %v85
  %v117 = vpop.f32.mrf.mxu0
  %v118 = vadd.f32 %v35, %v117
  %v119 = vpop.f32.mrf.mxu0
  %v120 = vadd.f32 %v35, %v119
  %121 = vmatmul.bf16.gmra.mxu0 %v88
  %v122 = vpop.f32.mrf.mxu0
  %v123 = vadd.f32 %v35, %v122
  %v124 = vpop.f32.mrf.mxu0
  %v125 = vadd.f32 %v35, %v124
  %126 = vmatmul.bf16.gmra.mxu0 %v91
  %v127 = vpop.f32.mrf.mxu0
  %v128 = vadd.f32 %v35, %v127
  %v129 = vpop.f32.mrf.mxu0
  %v130 = vadd.f32 %v35, %v129
  %131 = vmatmul.bf16.gmra.mxu0 %v94
  %v132 = vpop.f32.mrf.mxu0
  %v133 = vadd.f32 %v35, %v132
  %v134 = vpop.f32.mrf.mxu0
  %v135 = vadd.f32 %v35, %v134
  %136 = vmatmul.bf16.gmra.mxu0 %v97
  %v137 = vpop.f32.mrf.mxu0
  %v138 = vadd.f32 %v35, %v137
  %v139 = vpop.f32.mrf.mxu0
  %v140 = vadd.f32 %v35, %v139
  %141 = vmatmul.bf16.gmra.mxu0 %v100
  %v142 = vpop.f32.mrf.mxu0
  %v143 = vadd.f32 %v35, %v142
  %v144 = vpop.f32.mrf.mxu0
  %v145 = vadd.f32 %v35, %v144
  %146 = vmatmul.bf16.gmra.mxu0 %v103
  %v147 = vpop.f32.mrf.mxu0
  %v148 = vadd.f32 %v35, %v147
  %v149 = vpop.f32.mrf.mxu0
  %v150 = vadd.f32 %v35, %v149
  %151 = vmatmul.bf16.gmra.mxu0 %v106
  %v152 = vpop.f32.mrf.mxu0
  %v153 = vadd.f32 %v35, %v152
  %v154 = vpop.f32.mrf.mxu0
  %v155 = vadd.f32 %v35, %v154
  %156 = vdwg.mxu0
  %v157 = vmax.f32 %v118, 0.0
  %v158 = vmax.f32 %v120, 0.0
  %v159 = vmax.f32 %v123, 0.0
  %v160 = vmax.f32 %v125, 0.0
  %v161 = vmax.f32 %v128, 0.0
  %v162 = vmax.f32 %v130, 0.0
  %v163 = vmax.f32 %v133, 0.0
  %v164 = vmax.f32 %v135, 0.0
  %v165 = vmax.f32 %v138, 0.0
  %v166 = vmax.f32 %v140, 0.0
  %v167 = vmax.f32 %v143, 0.0
  %v168 = vmax.f32 %v145, 0.0
  %v169 = vmax.f32 %v148, 0.0
  %v170 = vmax.f32 %v150, 0.0
  %v171 = vmax.f32 %v153, 0.0
  %v172 = vmax.f32 %v155, 0.0
  %v173 = vpack.c.bf16 %v157, %v157
  %v174 = vpack.c.bf16 %v158, %v158
  %v175 = vpack.c.bf16 %v159, %v159
  %v176 = vpack.c.bf16 %v160, %v160
  %v177 = vpack.c.bf16 %v161, %v161
  %v178 = vpack.c.bf16 %v162, %v162
  %v179 = vpack.c.bf16 %v163, %v163
  %v180 = vpack.c.bf16 %v164, %v164
  %v181 = vpack.c.bf16 %v165, %v165
  %v182 = vpack.c.bf16 %v166, %v166
  %v183 = vpack.c.bf16 %v167, %v167
  %v184 = vpack.c.bf16 %v168, %v168
  %v185 = vpack.c.bf16 %v169, %v169
  %v186 = vpack.c.bf16 %v170, %v170
  %v187 = vpack.c.bf16 %v171, %v171
  %v188 = vpack.c.bf16 %v172, %v172
  %vm189 = vcmask 60416
  %190 = vst.msk [vmem:[%s3] sm:$0xf] %vm189, %v173
  %191 = vst.msk [vmem:[%s3 + $0x4] sm:$0xf] %vm189, %v174
  %192 = vst.msk [vmem:[%s3 + $0x8] sm:$0xf] %vm189, %v175
  %193 = vst.msk [vmem:[%s3 + $0xc] sm:$0xf] %vm189, %v176
  %194 = vst.msk [vmem:[%s3 + $0x10] sm:$0xf] %vm189, %v177
  %195 = vst.msk [vmem:[%s3 + $0x14] sm:$0xf] %vm189, %v178
  %196 = vst.msk [vmem:[%s3 + $0x18] sm:$0xf] %vm189, %v179
  %197 = vst.msk [vmem:[%s3 + $0x1c] sm:$0xf] %vm189, %v180
  %198 = vst.msk [vmem:[%s3 + $0x20] sm:$0xf] %vm189, %v181
  %199 = vst.msk [vmem:[%s3 + $0x24] sm:$0xf] %vm189, %v182
  %200 = vst.msk [vmem:[%s3 + $0x28] sm:$0xf] %vm189, %v183
  %201 = vst.msk [vmem:[%s3 + $0x2c] sm:$0xf] %vm189, %v184
  %202 = vst.msk [vmem:[%s3 + $0x30] sm:$0xf] %vm189, %v185
  %203 = vst.msk [vmem:[%s3 + $0x34] sm:$0xf] %vm189, %v186
  %204 = vst.msk [vmem:[%s3 + $0x38] sm:$0xf] %vm189, %v187
  %205 = vst.msk [vmem:[%s3 + $0x3c] sm:$0xf] %vm189, %v188
  // Predicated region
  $region14: #{tpu_custom_call.1} parent=0 // pred_check
    _
  $region15: #{tpu_custom_call.1} parent=0 // pred_check_branch
    %207 = sbr.rel (0) target = $region17
  $region16: #{tpu_custom_call.1} parent=0 // pred_region
    _
  $region17: #{tpu_custom_call.1} parent=0 // pred_fallthru
    _
  // Predicated region
  $region18: #{tpu_custom_call.1} parent=0 // pred_check
    _
  $region19: #{tpu_custom_call.1} parent=0 // pred_check_branch
    %209 = sbr.rel (0) target = $region21
  $region20: #{tpu_custom_call.1} parent=0 // pred_region
    _
  $region21: #{tpu_custom_call.1} parent=0 // pred_fallthru
    _

</llo_original>
